<compile_context>
chip_gen: v6e
topology: v6e:2x2x1
jax: 0.10.0
libtpu: 0.0.40
codegen_flags: <defaults>
</compile_context>

<pallas_src>
from typing import NamedTuple

import jax
import jax.numpy as jnp
from jax.experimental import pallas as pl
from jax.experimental.pallas import tpu as pltpu

_LANE = 128
_SUBLANE = 8
_NEG_BIG = -1e30  # padded output logits -> exp() underflows to exactly 0.0


def _round_up(x, m):
    return (x + m - 1) // m * m


# --------------------------------------------------------------------------
# Kernel
# --------------------------------------------------------------------------
def _mlp_softmax_kernel(x_ref, *refs):
    """refs = (w0, b0, w1, b1, ..., w_last, b_last, o_ref).

    Operates on one (tm, D_in_pad) batch tile.  All feature dims are padded to
    multiples of 128, so every matmul operand and the output write are
    lane-dense.  Chain of MXU matmuls + VPU ReLU, finished with a numerically
    stable softmax over the last (lane) axis.  Accumulation / elementwise math
    is float32 even when weights are bf16.
    """
    o_ref = refs[-1]
    param_refs = refs[:-1]
    n_layers = len(param_refs) // 2

    h = x_ref[...]
    for i in range(n_layers):
        w = param_refs[2 * i][...]        # (in_dim_pad, out_dim_pad)
        b = param_refs[2 * i + 1][...]    # (1, out_dim_pad), always f32
        if w.dtype != h.dtype:            # bf16-weight option: feed bf16 to MXU
            h = h.astype(w.dtype)
        h = jnp.dot(h, w, preferred_element_type=jnp.float32) + b
        if i < n_layers - 1:              # ReLU on all but the last linear
            h = jnp.maximum(h, 0.0)

    # softmax over the feature (lane) axis; padded cols hold -1e30 -> exp()==0
    m = jnp.max(h, axis=-1, keepdims=True)
    e = jnp.exp(h - m)
    s = jnp.sum(e, axis=-1, keepdims=True)
    # exact divide: s is only (tm, 1), negligible VALU cost, full f32 precision
    o_ref[...] = (e / s).astype(o_ref.dtype)


# --------------------------------------------------------------------------
# Wrapper-side helpers
# --------------------------------------------------------------------------
class PaddedNet(NamedTuple):
    flat: tuple    # (w0, b0, w1, b1, ...) padded, lane-dense
    dims: tuple    # true layer widths  [D_in, H, ..., D_out]
    pdims: tuple   # padded layer widths (multiples of 128)


def pad_params(params, weight_dtype=jnp.float32):
    """One-time padding of the parameters (hoisted off the inference hot path).

    params: list of (W:(in,out), b:(1,out)).  Padded hidden units are exact
    zeros; padded columns of the LAST layer's bias are -1e30 so the padded
    logits vanish under exp() and the softmax matches the unpadded math.
    """
    n_layers = len(params)
    dims = (int(params[0][0].shape[0]),) + tuple(int(w.shape[1]) for w, _ in params)
    pdims = tuple(_round_up(d, _LANE) for d in dims)

    flat = []
    for i, (w, b) in enumerate(params):
        din, dout = w.shape
        pin, pout = pdims[i], pdims[i + 1]
        w_p = jnp.zeros((pin, pout), weight_dtype).at[:din, :dout].set(
            w.astype(weight_dtype))
        bias_fill = 0.0 if i < n_layers - 1 else _NEG_BIG
        b_p = jnp.full((1, pout), bias_fill, jnp.float32).at[:, :dout].set(
            jnp.reshape(b, (1, -1)).astype(jnp.float32))
        flat.extend([w_p, b_p])
    return PaddedNet(flat=tuple(flat), dims=dims, pdims=pdims)


def _vmem_capacity_bytes():
    try:
        return int(pltpu.get_tpu_info().vmem_capacity_bytes)
    except Exception:
        return 64 * 1024 * 1024   # conservative (v7x per-TC VMEM)


def _hard_vmem_cap(vmem_cap):
    # 48 MiB leaves headroom on v7x's 64 MiB; 128 MiB parts can use ~100 MiB.
    return (48 << 20) if vmem_cap <= (64 << 20) else (100 << 20)


def _pick_tm(B, vmem_cap, pdims, resident_param_bytes):
    """Generation-aware batch-tile selection."""
    cap = 256 if vmem_cap <= (64 << 20) else 512
    tm = min(cap, _round_up(B, _SUBLANE))
    # Keep >= 2 grid steps when the batch is large enough, so the "parallel"
    # batch axis can actually be sharded across v7x's two TensorCores.
    if B >= 2 * 128 and _round_up(B, tm) // tm < 2:
        tm = max(128, _round_up((B + 1) // 2, _SUBLANE))
    # Shrink if activations would not fit next to the resident params.
    budget = _hard_vmem_cap(vmem_cap) - resident_param_bytes - (4 << 20)
    per_row = 4 * (2 * max(pdims) + pdims[0] + 2 * pdims[-1])  # live bytes/row
    while tm > _SUBLANE and tm * per_row > budget:
        tm //= 2
    return max(_SUBLANE, _round_up(tm, _SUBLANE))


# --------------------------------------------------------------------------
# Forward pass
# --------------------------------------------------------------------------
def net_forward(x, pnet: PaddedNet, *, tm=None):
    """x: (B, D_in) or (D_in,).  Returns (B, D_out) or (D_out,)."""
    squeeze = (x.ndim == 1)
    if squeeze:
        x = x[None, :]           # softmax(dim=0) of a vector == row softmax

    B, D_in = x.shape
    dims, pdims, flat = pnet.dims, pnet.pdims, list(pnet.flat)
    assert D_in == dims[0], (D_in, dims[0])
    n_layers = len(flat) // 2

    vmem_cap = _vmem_capacity_bytes()
    resident_bytes = sum(a.size * a.dtype.itemsize for a in flat)
    if tm is None:
        tm = _pick_tm(B, vmem_cap, pdims, resident_bytes)
    tm = max(_SUBLANE, _round_up(tm, _SUBLANE))
    B_p = _round_up(max(B, tm), tm)
    grid = (B_p // tm,)

    # Activation dtype: bf16 only if the weights are bf16 (cast once here, not
    # per-layer in-kernel).  For repeated calls, keep x pre-padded to avoid the
    # extra HBM round-trip of this pad.
    bf16 = jnp.dtype(jnp.bfloat16)
    x_dtype = bf16 if flat[0].dtype == bf16 else jnp.float32
    x_p = jnp.zeros((B_p, pdims[0]), x_dtype).at[:B, :D_in].set(x.astype(x_dtype))

    # Advisory cost estimate from TRUE (unpadded) dims.
    flops = 2 * B * sum(dims[i] * dims[i + 1] for i in range(n_layers))
    transcendentals = B * dims[-1]
    bytes_accessed = 4 * (B * dims[0] + B * dims[-1]
                          + sum(dims[i] * dims[i + 1] + dims[i + 1]
                                for i in range(n_layers)))
    cost = pl.CostEstimate(flops=int(flops),
                           transcendentals=int(transcendentals),
                           bytes_accessed=int(bytes_accessed))

    def _call(single_buffer_params):
        param_kw = (dict(pipeline_mode=pl.Buffered(1))
                    if single_buffer_params else {})
        # Tiled activations/output (auto double-buffered); resident weights /
        # biases via constant index_map (single-buffered when supported).
        in_specs = [pl.BlockSpec((tm, pdims[0]), lambda i: (i, 0))]
        for li in range(n_layers):
            pin, pout = pdims[li], pdims[li + 1]
            in_specs.append(pl.BlockSpec((pin, pout), lambda i: (0, 0), **param_kw))
            in_specs.append(pl.BlockSpec((1, pout), lambda i: (0, 0), **param_kw))
        out_spec = pl.BlockSpec((tm, pdims[-1]), lambda i: (i, 0))

        # Accurate VMEM budget: resident params x actual buffer count,
        # double-buffered I/O tiles, plus live per-layer intermediates.
        buf = 1 if single_buffer_params else 2
        param_bytes = resident_bytes * buf
        io_bytes = (2 * tm * pdims[0] * jnp.dtype(x_dtype).itemsize
                    + 2 * tm * pdims[-1] * 4)
        inter_bytes = tm * 4 * (2 * max(pdims) + pdims[-1])
        need = param_bytes + io_bytes + inter_bytes
        vmem_limit = int(min(max(int(need * 1.3) + (2 << 20), 8 << 20),
                             _hard_vmem_cap(vmem_cap)))

        return pl.pallas_call(
            _mlp_softmax_kernel,
            out_shape=jax.ShapeDtypeStruct((B_p, pdims[-1]), jnp.float32),
            grid_spec=pltpu.PrefetchScalarGridSpec(
                num_scalar_prefetch=0,
                grid=grid,
                in_specs=in_specs,
                out_specs=out_spec,
            ),
            compiler_params=pltpu.CompilerParams(
                dimension_semantics=("parallel",),
                vmem_limit_bytes=vmem_limit,
            ),
            cost_estimate=cost,
        )(x_p, *flat)

    try:
        out = _call(True)      # single-buffered resident params (half VMEM)
    except Exception:
        # TODO(synk): drop this fallback once pl.Buffered(1) on top-level
        # pallas_call specs is guaranteed; double-buffered path is still correct.
        out = _call(False)

    out = out[:B, :dims[-1]]   # slice away batch / output-column padding
    if squeeze:
        out = out[0]
    return out


# --------------------------------------------------------------------------
# Init & reference
# --------------------------------------------------------------------------
def init_params(key, D_in, H, D_out, layers_size):
    """Deterministic init mimicking PyTorch's default U(-1/sqrt(fan_in), ...)."""
    dims = [D_in] + [H] * (layers_size - 1) + [D_out]
    params = []
    for i in range(layers_size):
        fan_in, fan_out = dims[i], dims[i + 1]
        key, kw, kb = jax.random.split(key, 3)
        bound = 1.0 / jnp.sqrt(jnp.float32(fan_in))
        w = jax.random.uniform(kw, (fan_in, fan_out), jnp.float32, -bound, bound)
        b = jax.random.uniform(kb, (1, fan_out), jnp.float32, -bound, bound)
        params.append((w, b))
    return params


def reference_forward(x, params):
    """Pure-JAX reference of the PyTorch forward pass (float32)."""
    h = x
    n = len(params)
    for i, (w, b) in enumerate(params):
        h = h @ w + b
        if i < n - 1:
            h = jnp.maximum(h, 0.0)
    return jax.nn.softmax(h, axis=-1)


# --------------------------------------------------------------------------
# Demo
# --------------------------------------------------------------------------
if __name__ == "__main__":
    D_in, H, D_out, layers_size = 32, 32, 16, 3
    B = 32

    key = jax.random.PRNGKey(0)
    key, kx = jax.random.split(key)
    x = jax.random.normal(kx, (B, D_in), dtype=jnp.float32)
    params = init_params(key, D_in, H, D_out, layers_size)

    pnet = pad_params(params)            # one-time padding, off the hot path
    out = net_forward(x, pnet)           # default tm -> whole batch, grid=(1,)
    out = jax.block_until_ready(out)

    ref = reference_forward(x, params)
    assert out.shape == (B, D_out), out.shape
    assert jnp.allclose(jnp.sum(out, axis=1), 1.0, atol=1e-5)
    assert jnp.allclose(out, ref, atol=1e-5, rtol=1e-5)

    # 1-D input path of the PyTorch module (softmax over dim=0)
    out1 = jax.block_until_ready(net_forward(x[0], pnet))
    assert out1.shape == (D_out,), out1.shape
    assert jnp.allclose(out1, ref[0], atol=1e-5, rtol=1e-5)

    print("KERNEL_OK")
</pallas_src>

<mosaic_0001>
module attributes {stable_mosaic.version = 11 : i64} {
  func.func @_mlp_softmax_kernel(%arg0: i32, %arg1: memref<32x128xf32, #tpu.memory_space<vmem>>, %arg2: memref<128x128xf32, #tpu.memory_space<vmem>>, %arg3: memref<1x128xf32, #tpu.memory_space<vmem>>, %arg4: memref<128x128xf32, #tpu.memory_space<vmem>>, %arg5: memref<1x128xf32, #tpu.memory_space<vmem>>, %arg6: memref<128x128xf32, #tpu.memory_space<vmem>>, %arg7: memref<1x128xf32, #tpu.memory_space<vmem>>, %arg8: memref<32x128xf32, #tpu.memory_space<vmem>>) attributes {dimension_semantics = [#tpu.dimension_semantics<parallel>], iteration_bounds = array<i64: 1>, scalar_prefetch = 0 : i64, scratch_operands = 0 : i64, tpu.core_type = #tpu.core_type<tc>, window_params = [{transform_indices = @transform_0, window_bounds = array<i64: 32, 128>}, {pipeline_mode = #tpu.pipeline_mode<synchronous>, transform_indices = @transform_1, window_bounds = array<i64: 128, 128>}, {pipeline_mode = #tpu.pipeline_mode<synchronous>, transform_indices = @transform_2, window_bounds = array<i64: 1, 128>}, {pipeline_mode = #tpu.pipeline_mode<synchronous>, transform_indices = @transform_3, window_bounds = array<i64: 128, 128>}, {pipeline_mode = #tpu.pipeline_mode<synchronous>, transform_indices = @transform_4, window_bounds = array<i64: 1, 128>}, {pipeline_mode = #tpu.pipeline_mode<synchronous>, transform_indices = @transform_5, window_bounds = array<i64: 128, 128>}, {pipeline_mode = #tpu.pipeline_mode<synchronous>, transform_indices = @transform_6, window_bounds = array<i64: 1, 128>}, {transform_indices = @transform_7, window_bounds = array<i64: 32, 128>}]} {
    %c0 = arith.constant 0 : index
    %c0_0 = arith.constant 0 : index
    %0 = vector.load %arg1[%c0, %c0_0] : memref<32x128xf32, #tpu.memory_space<vmem>>, vector<32x128xf32>
    %c0_1 = arith.constant 0 : index
    %c0_2 = arith.constant 0 : index
    %1 = vector.load %arg2[%c0_1, %c0_2] : memref<128x128xf32, #tpu.memory_space<vmem>>, vector<128x128xf32>
    %c0_3 = arith.constant 0 : index
    %c0_4 = arith.constant 0 : index
    %2 = vector.load %arg3[%c0_3, %c0_4] : memref<1x128xf32, #tpu.memory_space<vmem>>, vector<1x128xf32>
    %cst = arith.constant dense<0.000000e+00> : vector<32x128xf32>
    %3 = tpu.matmul %0, %1, %cst {dimension_numbers = #tpu.dot_dimension_numbers<[1], [0], [0], [1], [0, 0, 1, 1], [], []>} : vector<32x128xf32>, vector<128x128xf32>, vector<32x128xf32> -> vector<32x128xf32>
    %4 = vector.broadcast %2 : vector<1x128xf32> to vector<32x128xf32>
    %5 = arith.addf %3, %4 : vector<32x128xf32>
    %cst_5 = arith.constant 0.000000e+00 : f32
    %6 = vector.broadcast %cst_5 : f32 to vector<32x128xf32>
    %7 = arith.maximumf %5, %6 : vector<32x128xf32>
    %c0_6 = arith.constant 0 : index
    %c0_7 = arith.constant 0 : index
    %8 = vector.load %arg4[%c0_6, %c0_7] : memref<128x128xf32, #tpu.memory_space<vmem>>, vector<128x128xf32>
    %c0_8 = arith.constant 0 : index
    %c0_9 = arith.constant 0 : index
    %9 = vector.load %arg5[%c0_8, %c0_9] : memref<1x128xf32, #tpu.memory_space<vmem>>, vector<1x128xf32>
    %cst_10 = arith.constant dense<0.000000e+00> : vector<32x128xf32>
    %10 = tpu.matmul %7, %8, %cst_10 {dimension_numbers = #tpu.dot_dimension_numbers<[1], [0], [0], [1], [0, 0, 1, 1], [], []>} : vector<32x128xf32>, vector<128x128xf32>, vector<32x128xf32> -> vector<32x128xf32>
    %11 = vector.broadcast %9 : vector<1x128xf32> to vector<32x128xf32>
    %12 = arith.addf %10, %11 : vector<32x128xf32>
    %cst_11 = arith.constant 0.000000e+00 : f32
    %13 = vector.broadcast %cst_11 : f32 to vector<32x128xf32>
    %14 = arith.maximumf %12, %13 : vector<32x128xf32>
    %c0_12 = arith.constant 0 : index
    %c0_13 = arith.constant 0 : index
    %15 = vector.load %arg6[%c0_12, %c0_13] : memref<128x128xf32, #tpu.memory_space<vmem>>, vector<128x128xf32>
    %c0_14 = arith.constant 0 : index
    %c0_15 = arith.constant 0 : index
    %16 = vector.load %arg7[%c0_14, %c0_15] : memref<1x128xf32, #tpu.memory_space<vmem>>, vector<1x128xf32>
    %cst_16 = arith.constant dense<0.000000e+00> : vector<32x128xf32>
    %17 = tpu.matmul %14, %15, %cst_16 {dimension_numbers = #tpu.dot_dimension_numbers<[1], [0], [0], [1], [0, 0, 1, 1], [], []>} : vector<32x128xf32>, vector<128x128xf32>, vector<32x128xf32> -> vector<32x128xf32>
    %18 = vector.broadcast %16 : vector<1x128xf32> to vector<32x128xf32>
    %19 = arith.addf %17, %18 : vector<32x128xf32>
    %cst_17 = arith.constant dense<0xFF800000> : vector<32xf32>
    %20 = vector.multi_reduction <maximumf>, %19, %cst_17 [1] : vector<32x128xf32> to vector<32xf32>
    %21 = vector.shape_cast %20 : vector<32xf32> to vector<32x1xf32>
    %22 = vector.broadcast %21 : vector<32x1xf32> to vector<32x128xf32>
    %23 = arith.subf %19, %22 : vector<32x128xf32>
    %24 = math.exp %23 : vector<32x128xf32>
    %cst_18 = arith.constant dense<0.000000e+00> : vector<32xf32>
    %25 = vector.multi_reduction <add>, %24, %cst_18 [1] : vector<32x128xf32> to vector<32xf32>
    %26 = vector.shape_cast %25 : vector<32xf32> to vector<32x1xf32>
    %27 = vector.broadcast %26 : vector<32x1xf32> to vector<32x128xf32>
    %28 = arith.divf %24, %27 : vector<32x128xf32>
    %c0_19 = arith.constant 0 : index
    %c0_20 = arith.constant 0 : index
    %29 = vector.load %arg8[%c0_19, %c0_20] : memref<32x128xf32, #tpu.memory_space<vmem>>, vector<32x128xf32>
    tpu.vector_store %arg8[%c0_19, %c0_20], %28 {strides = array<i32>} : memref<32x128xf32, #tpu.memory_space<vmem>>, vector<32x128xf32>,
    return
  }
  func.func @transform_0(%arg0: i32) -> (i32, i32) {
    %c0_i32 = arith.constant 0 : i32
    %c0_i32_0 = arith.constant 0 : i32
    return %arg0, %c0_i32 : i32, i32
  }
  func.func @transform_1(%arg0: i32) -> (i32, i32) {
    %c0_i32 = arith.constant 0 : i32
    %c0_i32_0 = arith.constant 0 : i32
    %c0_i32_1 = arith.constant 0 : i32
    return %c0_i32, %c0_i32_0 : i32, i32
  }
  func.func @transform_2(%arg0: i32) -> (i32, i32) {
    %c0_i32 = arith.constant 0 : i32
    %c0_i32_0 = arith.constant 0 : i32
    %c0_i32_1 = arith.constant 0 : i32
    return %c0_i32, %c0_i32_0 : i32, i32
  }
  func.func @transform_3(%arg0: i32) -> (i32, i32) {
    %c0_i32 = arith.constant 0 : i32
    %c0_i32_0 = arith.constant 0 : i32
    %c0_i32_1 = arith.constant 0 : i32
    return %c0_i32, %c0_i32_0 : i32, i32
  }
  func.func @transform_4(%arg0: i32) -> (i32, i32) {
    %c0_i32 = arith.constant 0 : i32
    %c0_i32_0 = arith.constant 0 : i32
    %c0_i32_1 = arith.constant 0 : i32
    return %c0_i32, %c0_i32_0 : i32, i32
  }
  func.func @transform_5(%arg0: i32) -> (i32, i32) {
    %c0_i32 = arith.constant 0 : i32
    %c0_i32_0 = arith.constant 0 : i32
    %c0_i32_1 = arith.constant 0 : i32
    return %c0_i32, %c0_i32_0 : i32, i32
  }
  func.func @transform_6(%arg0: i32) -> (i32, i32) {
    %c0_i32 = arith.constant 0 : i32
    %c0_i32_0 = arith.constant 0 : i32
    %c0_i32_1 = arith.constant 0 : i32
    return %c0_i32, %c0_i32_0 : i32, i32
  }
  func.func @transform_7(%arg0: i32) -> (i32, i32) {
    %c0_i32 = arith.constant 0 : i32
    %c0_i32_0 = arith.constant 0 : i32
    return %arg0, %c0_i32 : i32, i32
  }
}

module attributes {stable_mosaic.version = 11 : i64} {
  func.func @_mlp_softmax_kernel(%arg0: i32, %arg1: memref<32x128xf32, #tpu.memory_space<vmem>>, %arg2: memref<128x128xf32, #tpu.memory_space<vmem>>, %arg3: memref<1x128xf32, #tpu.memory_space<vmem>>, %arg4: memref<128x128xf32, #tpu.memory_space<vmem>>, %arg5: memref<1x128xf32, #tpu.memory_space<vmem>>, %arg6: memref<128x128xf32, #tpu.memory_space<vmem>>, %arg7: memref<1x128xf32, #tpu.memory_space<vmem>>, %arg8: memref<32x128xf32, #tpu.memory_space<vmem>>) attributes {dimension_semantics = [#tpu.dimension_semantics<parallel>], iteration_bounds = array<i64: 1>, scalar_prefetch = 0 : i64, scratch_operands = 0 : i64, tpu.core_type = #tpu.core_type<tc>, window_params = [{transform_indices = @transform_0, window_bounds = array<i64: 32, 128>}, {pipeline_mode = #tpu.pipeline_mode<synchronous>, transform_indices = @transform_1, window_bounds = array<i64: 128, 128>}, {pipeline_mode = #tpu.pipeline_mode<synchronous>, transform_indices = @transform_2, window_bounds = array<i64: 1, 128>}, {pipeline_mode = #tpu.pipeline_mode<synchronous>, transform_indices = @transform_3, window_bounds = array<i64: 128, 128>}, {pipeline_mode = #tpu.pipeline_mode<synchronous>, transform_indices = @transform_4, window_bounds = array<i64: 1, 128>}, {pipeline_mode = #tpu.pipeline_mode<synchronous>, transform_indices = @transform_5, window_bounds = array<i64: 128, 128>}, {pipeline_mode = #tpu.pipeline_mode<synchronous>, transform_indices = @transform_6, window_bounds = array<i64: 1, 128>}, {transform_indices = @transform_7, window_bounds = array<i64: 32, 128>}]} {
    %c0 = arith.constant 0 : index
    %c0_0 = arith.constant 0 : index
    %0 = vector.load %arg1[%c0, %c0_0] : memref<32x128xf32, #tpu.memory_space<vmem>>, vector<32x128xf32>
    %c0_1 = arith.constant 0 : index
    %c0_2 = arith.constant 0 : index
    %1 = vector.load %arg2[%c0_1, %c0_2] : memref<128x128xf32, #tpu.memory_space<vmem>>, vector<128x128xf32>
    %c0_3 = arith.constant 0 : index
    %c0_4 = arith.constant 0 : index
    %2 = vector.load %arg3[%c0_3, %c0_4] : memref<1x128xf32, #tpu.memory_space<vmem>>, vector<1x128xf32>
    %cst = arith.constant dense<0.000000e+00> : vector<32x128xf32>
    %3 = tpu.matmul %0, %1, %cst {dimension_numbers = #tpu.dot_dimension_numbers<[1], [0], [0], [1], [0, 0, 1, 1], [], []>} : vector<32x128xf32>, vector<128x128xf32>, vector<32x128xf32> -> vector<32x128xf32>
    %4 = vector.broadcast %2 : vector<1x128xf32> to vector<32x128xf32>
    %5 = arith.addf %3, %4 : vector<32x128xf32>
    %cst_5 = arith.constant 0.000000e+00 : f32
    %6 = vector.broadcast %cst_5 : f32 to vector<32x128xf32>
    %7 = arith.maximumf %5, %6 : vector<32x128xf32>
    %c0_6 = arith.constant 0 : index
    %c0_7 = arith.constant 0 : index
    %8 = vector.load %arg4[%c0_6, %c0_7] : memref<128x128xf32, #tpu.memory_space<vmem>>, vector<128x128xf32>
    %c0_8 = arith.constant 0 : index
    %c0_9 = arith.constant 0 : index
    %9 = vector.load %arg5[%c0_8, %c0_9] : memref<1x128xf32, #tpu.memory_space<vmem>>, vector<1x128xf32>
    %cst_10 = arith.constant dense<0.000000e+00> : vector<32x128xf32>
    %10 = tpu.matmul %7, %8, %cst_10 {dimension_numbers = #tpu.dot_dimension_numbers<[1], [0], [0], [1], [0, 0, 1, 1], [], []>} : vector<32x128xf32>, vector<128x128xf32>, vector<32x128xf32> -> vector<32x128xf32>
    %11 = vector.broadcast %9 : vector<1x128xf32> to vector<32x128xf32>
    %12 = arith.addf %10, %11 : vector<32x128xf32>
    %cst_11 = arith.constant 0.000000e+00 : f32
    %13 = vector.broadcast %cst_11 : f32 to vector<32x128xf32>
    %14 = arith.maximumf %12, %13 : vector<32x128xf32>
    %c0_12 = arith.constant 0 : index
    %c0_13 = arith.constant 0 : index
    %15 = vector.load %arg6[%c0_12, %c0_13] : memref<128x128xf32, #tpu.memory_space<vmem>>, vector<128x128xf32>
    %c0_14 = arith.constant 0 : index
    %c0_15 = arith.constant 0 : index
    %16 = vector.load %arg7[%c0_14, %c0_15] : memref<1x128xf32, #tpu.memory_space<vmem>>, vector<1x128xf32>
    %cst_16 = arith.constant dense<0.000000e+00> : vector<32x128xf32>
    %17 = tpu.matmul %14, %15, %cst_16 {dimension_numbers = #tpu.dot_dimension_numbers<[1], [0], [0], [1], [0, 0, 1, 1], [], []>} : vector<32x128xf32>, vector<128x128xf32>, vector<32x128xf32> -> vector<32x128xf32>
    %18 = vector.broadcast %16 : vector<1x128xf32> to vector<32x128xf32>
    %19 = arith.addf %17, %18 : vector<32x128xf32>
    %cst_17 = arith.constant dense<0xFF800000> : vector<32xf32>
    %20 = vector.multi_reduction <maximumf>, %19, %cst_17 [1] : vector<32x128xf32> to vector<32xf32>
    %21 = vector.shape_cast %20 : vector<32xf32> to vector<32x1xf32>
    %22 = vector.broadcast %21 : vector<32x1xf32> to vector<32x128xf32>
    %23 = arith.subf %19, %22 : vector<32x128xf32>
    %24 = math.exp %23 : vector<32x128xf32>
    %cst_18 = arith.constant dense<0.000000e+00> : vector<32xf32>
    %25 = vector.multi_reduction <add>, %24, %cst_18 [1] : vector<32x128xf32> to vector<32xf32>
    %26 = vector.shape_cast %25 : vector<32xf32> to vector<32x1xf32>
    %27 = vector.broadcast %26 : vector<32x1xf32> to vector<32x128xf32>
    %28 = arith.divf %24, %27 : vector<32x128xf32>
    %c0_19 = arith.constant 0 : index
    %c0_20 = arith.constant 0 : index
    %29 = vector.load %arg8[%c0_19, %c0_20] : memref<32x128xf32, #tpu.memory_space<vmem>>, vector<32x128xf32>
    tpu.vector_store %arg8[%c0_19, %c0_20], %28 {strides = array<i32>} : memref<32x128xf32, #tpu.memory_space<vmem>>, vector<32x128xf32>,
    return
  }
  func.func @transform_0(%arg0: i32) -> (i32, i32) {
    %c0_i32 = arith.constant 0 : i32
    %c0_i32_0 = arith.constant 0 : i32
    return %arg0, %c0_i32 : i32, i32
  }
  func.func @transform_1(%arg0: i32) -> (i32, i32) {
    %c0_i32 = arith.constant 0 : i32
    %c0_i32_0 = arith.constant 0 : i32
    %c0_i32_1 = arith.constant 0 : i32
    return %c0_i32, %c0_i32_0 : i32, i32
  }
  func.func @transform_2(%arg0: i32) -> (i32, i32) {
    %c0_i32 = arith.constant 0 : i32
    %c0_i32_0 = arith.constant 0 : i32
    %c0_i32_1 = arith.constant 0 : i32
    return %c0_i32, %c0_i32_0 : i32, i32
  }
  func.func @transform_3(%arg0: i32) -> (i32, i32) {
    %c0_i32 = arith.constant 0 : i32
    %c0_i32_0 = arith.constant 0 : i32
    %c0_i32_1 = arith.constant 0 : i32
    return %c0_i32, %c0_i32_0 : i32, i32
  }
  func.func @transform_4(%arg0: i32) -> (i32, i32) {
    %c0_i32 = arith.constant 0 : i32
    %c0_i32_0 = arith.constant 0 : i32
    %c0_i32_1 = arith.constant 0 : i32
    return %c0_i32, %c0_i32_0 : i32, i32
  }
  func.func @transform_5(%arg0: i32) -> (i32, i32) {
    %c0_i32 = arith.constant 0 : i32
    %c0_i32_0 = arith.constant 0 : i32
    %c0_i32_1 = arith.constant 0 : i32
    return %c0_i32, %c0_i32_0 : i32, i32
  }
  func.func @transform_6(%arg0: i32) -> (i32, i32) {
    %c0_i32 = arith.constant 0 : i32
    %c0_i32_0 = arith.constant 0 : i32
    %c0_i32_1 = arith.constant 0 : i32
    return %c0_i32, %c0_i32_0 : i32, i32
  }
  func.func @transform_7(%arg0: i32) -> (i32, i32) {
    %c0_i32 = arith.constant 0 : i32
    %c0_i32_0 = arith.constant 0 : i32
    return %arg0, %c0_i32 : i32, i32
  }
}

</mosaic_0001>

<llo_original>
// kernel: tpu_custom_call.1
$region0: #{tpu_custom_call.1}
  #allocation0 [shape = 'u32[]', space=smem, size = 0x4, offset = 0x4, fixed_abs, tag = 'smem constant byte address 0x4 - core index']
  #allocation1 [shape = 'u32[144,128]{1,0:T(1,128)}', space=vmem, size = 0x12000, scoped, tag = 'internal scratch']
  %s0 = inlined_call_operand.hbm [shape: f32[32,128], index: 0, kind: input, shape index: {}]
  %s1 = inlined_call_operand.hbm [shape: f32[128,128], index: 1, kind: input, shape index: {}]
  %s2 = inlined_call_operand.vmem [shape: f32[1,128], index: 2, kind: input, shape index: {}]
  %s3 = inlined_call_operand.hbm [shape: f32[128,128], index: 3, kind: input, shape index: {}]
  %s4 = inlined_call_operand.vmem [shape: f32[1,128], index: 4, kind: input, shape index: {}]
  %s5 = inlined_call_operand.hbm [shape: f32[128,128], index: 5, kind: input, shape index: {}]
  %s6 = inlined_call_operand.vmem [shape: f32[1,128], index: 6, kind: input, shape index: {}]
  %s7 = inlined_call_operand.hbm [shape: f32[32,128], index: 7, kind: output, shape index: {}]
  %s8 = sld [smem:[#allocation0]]
  $region54: #{tpu_custom_call.1} parent=0
    _
  %s10 = ssub.s32 1, %s8
  %s11 = scalar_select 0, %s10, %s8
  $region1: #{tpu_custom_call.1} parent=0
    #allocation2 [shape = 'u8[16384]{0}', space=vmem, size = 0x4000, scoped, tag = 'input window, operand 0, single buffered']
    #allocation3 [shape = 's32[1]{0}', space=sflag, size = 0x4, scoped, tag = 'scoped memory for tpu_custom_call.1']
    #allocation4 [shape = 's32[1]{0}', space=sflag, size = 0x4, scoped, tag = 'scoped memory for tpu_custom_call.1']
    #allocation5 [shape = 'u8[65536]{0}', space=vmem, size = 0x10000, scoped, tag = 'input window, operand 1, single buffered']
    #allocation6 [shape = 's32[1]{0}', space=sflag, size = 0x4, scoped, tag = 'scoped memory for tpu_custom_call.1']
    #allocation7 [shape = 'u8[65536]{0}', space=vmem, size = 0x10000, scoped, tag = 'input window, operand 3, single buffered']
    #allocation8 [shape = 'u8[65536]{0}', space=vmem, size = 0x10000, scoped, tag = 'input window, operand 5, single buffered']
    #allocation9 [shape = 's32[1]{0}', space=sflag, size = 0x4, scoped, tag = 'scoped memory for tpu_custom_call.1']
    #allocation10 [shape = 'u8[16384]{0}', space=vmem, size = 0x4000, scoped, tag = 'output window, operand 0, single buffered']
    %12 = vsyncpa [#allocation3], 0
    %13 = vsyncpa [#allocation6], 0
    %14 = vsyncpa [#allocation9], 0
    %15 = vsyncpa [#allocation4], 0
    // Predicated region
    $region2: #{tpu_custom_call.1} parent=1 // pred_check
      _
    $region3: #{tpu_custom_call.1} parent=1 // pred_check_branch
      %17 = sbr.rel (0) target = $region5
    $region4: #{tpu_custom_call.1} parent=1 // pred_region
      %s19 = ssub.s32 512, 512
      %20 = vsyncadd [#allocation3], %s19
      %s21 = sshll.u32 [#allocation2], 4
      %s22 = int_to_ptr.vmem [resolvable:$true] %s21
      %27 = dma.hbm_to_vmem [thread:$0]  %s0, 512, %s22, [#allocation3], 128, 128, 8
    $region5: #{tpu_custom_call.1} parent=1 // pred_fallthru
      _
    // Predicated region
    $region6: #{tpu_custom_call.1} parent=1 // pred_check
      _
    $region7: #{tpu_custom_call.1} parent=1 // pred_check_branch
      %29 = sbr.rel (0) target = $region9
    $region8: #{tpu_custom_call.1} parent=1 // pred_region
      %s31 = ssub.s32 2048, 2048
      %32 = vsyncadd [#allocation6], %s31
      %s33 = sshll.u32 [#allocation5], 4
      %s34 = int_to_ptr.vmem [resolvable:$true] %s33
      %39 = dma.hbm_to_vmem [thread:$0]  %s1, 2048, %s34, [#allocation6], 128, 128, 8
    $region9: #{tpu_custom_call.1} parent=1 // pred_fallthru
      _
    // Predicated region
    $region10: #{tpu_custom_call.1} parent=1 // pred_check
      _
    $region11: #{tpu_custom_call.1} parent=1 // pred_check_branch
      %41 = sbr.rel (0) target = $region13
    $region12: #{tpu_custom_call.1} parent=1 // pred_region
      _
    $region13: #{tpu_custom_call.1} parent=1 // pred_fallthru
      _
    // Predicated region
    $region14: #{tpu_custom_call.1} parent=1 // pred_check
      _
    $region15: #{tpu_custom_call.1} parent=1 // pred_check_branch
      %43 = sbr.rel (0) target = $region17
    $region16: #{tpu_custom_call.1} parent=1 // pred_region
      %s45 = ssub.s32 2048, 2048
      %46 = vsyncadd [#allocation6], %s45
      %s47 = sshll.u32 [#allocation7], 4
      %s48 = int_to_ptr.vmem [resolvable:$true] %s47
      %53 = dma.hbm_to_vmem [thread:$0]  %s3, 2048, %s48, [#allocation6], 128, 128, 8
    $region17: #{tpu_custom_call.1} parent=1 // pred_fallthru
      _
    // Predicated region
    $region18: #{tpu_custom_call.1} parent=1 // pred_check
      _
    $region19: #{tpu_custom_call.1} parent=1 // pred_check_branch
      %55 = sbr.rel (0) target = $region21
    $region20: #{tpu_custom_call.1} parent=1 // pred_region
      _
    $region21: #{tpu_custom_call.1} parent=1 // pred_fallthru
      _
    // Predicated region
    $region22: #{tpu_custom_call.1} parent=1 // pred_check
      _
    $region23: #{tpu_custom_call.1} parent=1 // pred_check_branch
      %57 = sbr.rel (0) target = $region25
    $region24: #{tpu_custom_call.1} parent=1 // pred_region
      %s59 = ssub.s32 2048, 2048
      %60 = vsyncadd [#allocation9], %s59
      %s61 = sshll.u32 [#allocation8], 4
      %s62 = int_to_ptr.vmem [resolvable:$true] %s61
      %67 = dma.hbm_to_vmem [thread:$0]  %s5, 2048, %s62, [#allocation9], 128, 128, 8
    $region25: #{tpu_custom_call.1} parent=1 // pred_fallthru
      _
    // Predicated region
    $region26: #{tpu_custom_call.1} parent=1 // pred_check
      _
    $region27: #{tpu_custom_call.1} parent=1 // pred_check_branch
      %69 = sbr.rel (0) target = $region29
    $region28: #{tpu_custom_call.1} parent=1 // pred_region
      _
    $region29: #{tpu_custom_call.1} parent=1 // pred_fallthru
      _
    // Predicated region
    $region30: #{tpu_custom_call.1} parent=1 // pred_check
      _
    $region31: #{tpu_custom_call.1} parent=1 // pred_check_branch
      %71 = sbr.rel (0) target = $region33
    $region32: #{tpu_custom_call.1} parent=1 // pred_region
      %72 = dma.done [#allocation3], 512
    $region33: #{tpu_custom_call.1} parent=1 // pred_fallthru
      _
    // Predicated region
    $region34: #{tpu_custom_call.1} parent=1 // pred_check
      _
    $region35: #{tpu_custom_call.1} parent=1 // pred_check_branch
      %74 = sbr.rel (0) target = $region37
    $region36: #{tpu_custom_call.1} parent=1 // pred_region
      %75 = dma.done [#allocation6], 2048
    $region37: #{tpu_custom_call.1} parent=1 // pred_fallthru
      _
    // Predicated region
    $region38: #{tpu_custom_call.1} parent=1 // pred_check
      _
    $region39: #{tpu_custom_call.1} parent=1 // pred_check_branch
      %77 = sbr.rel (0) target = $region41
    $region40: #{tpu_custom_call.1} parent=1 // pred_region
      %78 = dma.done [#allocation6], 2048
    $region41: #{tpu_custom_call.1} parent=1 // pred_fallthru
      _
    // Predicated region
    $region42: #{tpu_custom_call.1} parent=1 // pred_check
      _
    $region43: #{tpu_custom_call.1} parent=1 // pred_check_branch
      %80 = sbr.rel (0) target = $region45
    $region44: #{tpu_custom_call.1} parent=1 // pred_region
      %81 = dma.done [#allocation9], 2048
    $region45: #{tpu_custom_call.1} parent=1 // pred_fallthru
      _
    %v82 = vld [vmem:[#allocation2] sm:$0xff]
    %v83 = vld [vmem:[#allocation2 + $0x8] sm:$0xff]
    %v84 = vld [vmem:[#allocation2 + $0x10] sm:$0xff]
    %v85 = vld [vmem:[#allocation2 + $0x18] sm:$0xff]
    %v86 = vld [vmem:[#allocation5] sm:$0xff]
    %v87 = vld [vmem:[#allocation5 + $0x8] sm:$0xff]
    %v88 = vld [vmem:[#allocation5 + $0x10] sm:$0xff]
    %v89 = vld [vmem:[#allocation5 + $0x18] sm:$0xff]
    %v90 = vld [vmem:[#allocation5 + $0x20] sm:$0xff]
    %v91 = vld [vmem:[#allocation5 + $0x28] sm:$0xff]
    %v92 = vld [vmem:[#allocation5 + $0x30] sm:$0xff]
    %v93 = vld [vmem:[#allocation5 + $0x38] sm:$0xff]
    %v94 = vld [vmem:[#allocation5 + $0x40] sm:$0xff]
    %v95 = vld [vmem:[#allocation5 + $0x48] sm:$0xff]
    %v96 = vld [vmem:[#allocation5 + $0x50] sm:$0xff]
    %v97 = vld [vmem:[#allocation5 + $0x58] sm:$0xff]
    %v98 = vld [vmem:[#allocation5 + $0x60] sm:$0xff]
    %v99 = vld [vmem:[#allocation5 + $0x68] sm:$0xff]
    %v100 = vld [vmem:[#allocation5 + $0x70] sm:$0xff]
    %v101 = vld [vmem:[#allocation5 + $0x78] sm:$0xff]
    %v102 = vld [vmem:[%s2] sm:$0x1]
    %v104 = vlaneseq
    %v105 = vshrl.u32 %v104, 7
    %v106 = vsub.s32 0, %v105
    %v107 = vrot.slane %v102, %v106
    %109 = vmatprep.subr.mxu0 0.0
    %110 = vmatpush1.msra.mxu0 %v101
    %111 = vmatprep.subr.mxu0 0.0
    %112 = vmatpush1.msra.mxu0 %v100
    %113 = vmatprep.subr.mxu0 0.0
    %114 = vmatpush1.msra.mxu0 %v99
    %115 = vmatprep.subr.mxu0 0.0
    %116 = vmatpush1.msra.mxu0 %v98
    %117 = vmatprep.subr.mxu0 0.0
    %118 = vmatpush1.msra.mxu0 %v97
    %119 = vmatprep.subr.mxu0 0.0
    %120 = vmatpush1.msra.mxu0 %v96
    %121 = vmatprep.subr.mxu0 0.0
    %122 = vmatpush1.msra.mxu0 %v95
    %123 = vmatprep.subr.mxu0 0.0
    %124 = vmatpush1.msra.mxu0 %v94
    %125 = vmatprep.subr.mxu0 0.0
    %126 = vmatpush1.msra.mxu0 %v93
    %127 = vmatprep.subr.mxu0 0.0
    %128 = vmatpush1.msra.mxu0 %v92
    %129 = vmatprep.subr.mxu0 0.0
    %130 = vmatpush1.msra.mxu0 %v91
    %131 = vmatprep.subr.mxu0 0.0
    %132 = vmatpush1.msra.mxu0 %v90
    %133 = vmatprep.subr.mxu0 0.0
    %134 = vmatpush1.msra.mxu0 %v89
    %135 = vmatprep.subr.mxu0 0.0
    %136 = vmatpush1.msra.mxu0 %v88
    %137 = vmatprep.subr.mxu0 0.0
    %138 = vmatpush1.msra.mxu0 %v87
    %139 = vmatprep.subr.mxu0 0.0
    %140 = vmatpush1.msra.mxu0 %v86
    %141 = vmatprep.subr.mxu0 0.0
    %142 = vmatpush2.msra.mxu0 0.0
    %143 = vmatprep.subr.mxu0 0.0
    %144 = vmatpush2.msra.mxu0 0.0
    %145 = vmatprep.subr.mxu0 0.0
    %146 = vmatpush2.msra.mxu0 0.0
    %147 = vmatprep.subr.mxu0 0.0
    %148 = vmatpush2.msra.mxu0 0.0
    %149 = vmatprep.subr.mxu0 0.0
    %150 = vmatpush2.msra.mxu0 0.0
    %151 = vmatprep.subr.mxu0 0.0
    %152 = vmatpush2.msra.mxu0 0.0
    %153 = vmatprep.subr.mxu0 0.0
    %154 = vmatpush2.msra.mxu0 0.0
    %155 = vmatprep.subr.mxu0 0.0
    %156 = vmatpush2.msra.mxu0 0.0
    %157 = vmatprep.subr.mxu0 0.0
    %158 = vmatpush2.msra.mxu0 0.0
    %159 = vmatprep.subr.mxu0 0.0
    %160 = vmatpush2.msra.mxu0 0.0
    %161 = vmatprep.subr.mxu0 0.0
    %162 = vmatpush2.msra.mxu0 0.0
    %163 = vmatprep.subr.mxu0 0.0
    %164 = vmatpush2.msra.mxu0 0.0
    %165 = vmatprep.subr.mxu0 0.0
    %166 = vmatpush2.msra.mxu0 0.0
    %167 = vmatprep.subr.mxu0 0.0
    %168 = vmatpush2.msra.mxu0 0.0
    %169 = vmatprep.subr.mxu0 0.0
    %170 = vmatpush2.msra.mxu0 0.0
    %171 = vmatprep.subr.mxu0 0.0
    %172 = vmatpush2.msra.mxu0 0.0
    %173 = vmatprep.mubr.f32.mxu0 0.0
    %174 = vmatmul.mubr.f32.gmra.mxu0 %v82
    %v175 = vpop.f32.mrf.mxu0
    %v176 = vadd.f32 %v107, %v175
    %v177 = vpop.f32.mrf.mxu0
    %178 = vmatprep.mubr.f32.mxu0 0.0
    %179 = vmatmul.mubr.f32.gmra.mxu0 %v83
    %v180 = vpop.f32.mrf.mxu0
    %v181 = vadd.f32 %v107, %v180
    %v182 = vpop.f32.mrf.mxu0
    %183 = vmatprep.mubr.f32.mxu0 0.0
    %184 = vmatmul.mubr.f32.gmra.mxu0 %v84
    %v185 = vpop.f32.mrf.mxu0
    %v186 = vadd.f32 %v107, %v185
    %v187 = vpop.f32.mrf.mxu0
    %188 = vmatprep.mubr.f32.mxu0 0.0
    %189 = vmatmul.mubr.f32.gmra.mxu0 %v85
    %v190 = vpop.f32.mrf.mxu0
    %v191 = vadd.f32 %v107, %v190
    %v192 = vpop.f32.mrf.mxu0
    %193 = vdwg.mxu0
    %v194 = vmax.f32 %v176, 0.0
    %v195 = vmax.f32 %v181, 0.0
    %v196 = vmax.f32 %v186, 0.0
    %v197 = vmax.f32 %v191, 0.0
    %v198 = vld [vmem:[#allocation7] sm:$0xff]
    %v199 = vld [vmem:[#allocation7 + $0x8] sm:$0xff]
    %v200 = vld [vmem:[#allocation7 + $0x10] sm:$0xff]
    %v201 = vld [vmem:[#allocation7 + $0x18] sm:$0xff]
    %v202 = vld [vmem:[#allocation7 + $0x20] sm:$0xff]
    %v203 = vld [vmem:[#allocation7 + $0x28] sm:$0xff]
    %v204 = vld [vmem:[#allocation7 + $0x30] sm:$0xff]
    %v205 = vld [vmem:[#allocation7 + $0x38] sm:$0xff]
    %v206 = vld [vmem:[#allocation7 + $0x40] sm:$0xff]
    %v207 = vld [vmem:[#allocation7 + $0x48] sm:$0xff]
    %v208 = vld [vmem:[#allocation7 + $0x50] sm:$0xff]
    %v209 = vld [vmem:[#allocation7 + $0x58] sm:$0xff]
    %v210 = vld [vmem:[#allocation7 + $0x60] sm:$0xff]
    %v211 = vld [vmem:[#allocation7 + $0x68] sm:$0xff]
    %v212 = vld [vmem:[#allocation7 + $0x70] sm:$0xff]
    %v213 = vld [vmem:[#allocation7 + $0x78] sm:$0xff]
    %v214 = vld [vmem:[%s4] sm:$0x1]
    %v216 = vlaneseq
    %v217 = vshrl.u32 %v216, 7
    %v218 = vsub.s32 0, %v217
    %v219 = vrot.slane %v214, %v218
    %221 = vmatprep.subr.mxu0 0.0
    %222 = vmatpush1.msra.mxu0 %v213
    %223 = vmatprep.subr.mxu0 0.0
    %224 = vmatpush1.msra.mxu0 %v212
    %225 = vmatprep.subr.mxu0 0.0
    %226 = vmatpush1.msra.mxu0 %v211
    %227 = vmatprep.subr.mxu0 0.0
    %228 = vmatpush1.msra.mxu0 %v210
    %229 = vmatprep.subr.mxu0 0.0
    %230 = vmatpush1.msra.mxu0 %v209
    %231 = vmatprep.subr.mxu0 0.0
    %232 = vmatpush1.msra.mxu0 %v208
    %233 = vmatprep.subr.mxu0 0.0
    %234 = vmatpush1.msra.mxu0 %v207
    %235 = vmatprep.subr.mxu0 0.0
    %236 = vmatpush1.msra.mxu0 %v206
    %237 = vmatprep.subr.mxu0 0.0
    %238 = vmatpush1.msra.mxu0 %v205
    %239 = vmatprep.subr.mxu0 0.0
    %240 = vmatpush1.msra.mxu0 %v204
    %241 = vmatprep.subr.mxu0 0.0
    %242 = vmatpush1.msra.mxu0 %v203
    %243 = vmatprep.subr.mxu0 0.0
    %244 = vmatpush1.msra.mxu0 %v202
    %245 = vmatprep.subr.mxu0 0.0
    %246 = vmatpush1.msra.mxu0 %v201
    %247 = vmatprep.subr.mxu0 0.0
    %248 = vmatpush1.msra.mxu0 %v200
    %249 = vmatprep.subr.mxu0 0.0
    %250 = vmatpush1.msra.mxu0 %v199
    %251 = vmatprep.subr.mxu0 0.0
    %252 = vmatpush1.msra.mxu0 %v198
    %253 = vmatprep.subr.mxu0 0.0
    %254 = vmatpush2.msra.mxu0 0.0
    %255 = vmatprep.subr.mxu0 0.0
    %256 = vmatpush2.msra.mxu0 0.0
    %257 = vmatprep.subr.mxu0 0.0
    %258 = vmatpush2.msra.mxu0 0.0
    %259 = vmatprep.subr.mxu0 0.0
    %260 = vmatpush2.msra.mxu0 0.0
    %261 = vmatprep.subr.mxu0 0.0
    %262 = vmatpush2.msra.mxu0 0.0
    %263 = vmatprep.subr.mxu0 0.0
    %264 = vmatpush2.msra.mxu0 0.0
    %265 = vmatprep.subr.mxu0 0.0
    %266 = vmatpush2.msra.mxu0 0.0
    %267 = vmatprep.subr.mxu0 0.0
    %268 = vmatpush2.msra.mxu0 0.0
    %269 = vmatprep.subr.mxu0 0.0
    %270 = vmatpush2.msra.mxu0 0.0
    %271 = vmatprep.subr.mxu0 0.0
    %272 = vmatpush2.msra.mxu0 0.0
    %273 = vmatprep.subr.mxu0 0.0
    %274 = vmatpush2.msra.mxu0 0.0
    %275 = vmatprep.subr.mxu0 0.0
    %276 = vmatpush2.msra.mxu0 0.0
    %277 = vmatprep.subr.mxu0 0.0
    %278 = vmatpush2.msra.mxu0 0.0
    %279 = vmatprep.subr.mxu0 0.0
    %280 = vmatpush2.msra.mxu0 0.0
    %281 = vmatprep.subr.mxu0 0.0
    %282 = vmatpush2.msra.mxu0 0.0
    %283 = vmatprep.subr.mxu0 0.0
    %284 = vmatpush2.msra.mxu0 0.0
    %285 = vmatprep.mubr.f32.mxu0 0.0
    %286 = vmatmul.mubr.f32.gmra.mxu0 %v194
    %v287 = vpop.f32.mrf.mxu0
    %v288 = vadd.f32 %v219, %v287
    %v289 = vpop.f32.mrf.mxu0
    %290 = vmatprep.mubr.f32.mxu0 0.0
    %291 = vmatmul.mubr.f32.gmra.mxu0 %v195
    %v292 = vpop.f32.mrf.mxu0
    %v293 = vadd.f32 %v219, %v292
    %v294 = vpop.f32.mrf.mxu0
    %295 = vmatprep.mubr.f32.mxu0 0.0
    %296 = vmatmul.mubr.f32.gmra.mxu0 %v196
    %v297 = vpop.f32.mrf.mxu0
    %v298 = vadd.f32 %v219, %v297
    %v299 = vpop.f32.mrf.mxu0
    %300 = vmatprep.mubr.f32.mxu0 0.0
    %301 = vmatmul.mubr.f32.gmra.mxu0 %v197
    %v302 = vpop.f32.mrf.mxu0
    %v303 = vadd.f32 %v219, %v302
    %v304 = vpop.f32.mrf.mxu0
    %305 = vdwg.mxu0
    %v306 = vmax.f32 %v288, 0.0
    %v307 = vmax.f32 %v293, 0.0
    %v308 = vmax.f32 %v298, 0.0
    %v309 = vmax.f32 %v303, 0.0
    %v310 = vld [vmem:[#allocation8] sm:$0xff]
    %v311 = vld [vmem:[#allocation8 + $0x8] sm:$0xff]
    %v312 = vld [vmem:[#allocation8 + $0x10] sm:$0xff]
    %v313 = vld [vmem:[#allocation8 + $0x18] sm:$0xff]
    %v314 = vld [vmem:[#allocation8 + $0x20] sm:$0xff]
    %v315 = vld [vmem:[#allocation8 + $0x28] sm:$0xff]
    %v316 = vld [vmem:[#allocation8 + $0x30] sm:$0xff]
    %v317 = vld [vmem:[#allocation8 + $0x38] sm:$0xff]
    %v318 = vld [vmem:[#allocation8 + $0x40] sm:$0xff]
    %v319 = vld [vmem:[#allocation8 + $0x48] sm:$0xff]
    %v320 = vld [vmem:[#allocation8 + $0x50] sm:$0xff]
    %v321 = vld [vmem:[#allocation8 + $0x58] sm:$0xff]
    %v322 = vld [vmem:[#allocation8 + $0x60] sm:$0xff]
    %v323 = vld [vmem:[#allocation8 + $0x68] sm:$0xff]
    %v324 = vld [vmem:[#allocation8 + $0x70] sm:$0xff]
    %v325 = vld [vmem:[#allocation8 + $0x78] sm:$0xff]
    %v326 = vld [vmem:[%s6] sm:$0x1]
    %v328 = vlaneseq
    %v329 = vshrl.u32 %v328, 7
    %v330 = vsub.s32 0, %v329
    %v331 = vrot.slane %v326, %v330
    %333 = vmatprep.subr.mxu0 0.0
    %334 = vmatpush1.msra.mxu0 %v325
    %335 = vmatprep.subr.mxu0 0.0
    %336 = vmatpush1.msra.mxu0 %v324
    %337 = vmatprep.subr.mxu0 0.0
    %338 = vmatpush1.msra.mxu0 %v323
    %339 = vmatprep.subr.mxu0 0.0
    %340 = vmatpush1.msra.mxu0 %v322
    %341 = vmatprep.subr.mxu0 0.0
    %342 = vmatpush1.msra.mxu0 %v321
    %343 = vmatprep.subr.mxu0 0.0
    %344 = vmatpush1.msra.mxu0 %v320
    %345 = vmatprep.subr.mxu0 0.0
    %346 = vmatpush1.msra.mxu0 %v319
    %347 = vmatprep.subr.mxu0 0.0
    %348 = vmatpush1.msra.mxu0 %v318
    %349 = vmatprep.subr.mxu0 0.0
    %350 = vmatpush1.msra.mxu0 %v317
    %351 = vmatprep.subr.mxu0 0.0
    %352 = vmatpush1.msra.mxu0 %v316
    %353 = vmatprep.subr.mxu0 0.0
    %354 = vmatpush1.msra.mxu0 %v315
    %355 = vmatprep.subr.mxu0 0.0
    %356 = vmatpush1.msra.mxu0 %v314
    %357 = vmatprep.subr.mxu0 0.0
    %358 = vmatpush1.msra.mxu0 %v313
    %359 = vmatprep.subr.mxu0 0.0
    %360 = vmatpush1.msra.mxu0 %v312
    %361 = vmatprep.subr.mxu0 0.0
    %362 = vmatpush1.msra.mxu0 %v311
    %363 = vmatprep.subr.mxu0 0.0
    %364 = vmatpush1.msra.mxu0 %v310
    %365 = vmatprep.subr.mxu0 0.0
    %366 = vmatpush2.msra.mxu0 0.0
    %367 = vmatprep.subr.mxu0 0.0
    %368 = vmatpush2.msra.mxu0 0.0
    %369 = vmatprep.subr.mxu0 0.0
    %370 = vmatpush2.msra.mxu0 0.0
    %371 = vmatprep.subr.mxu0 0.0
    %372 = vmatpush2.msra.mxu0 0.0
    %373 = vmatprep.subr.mxu0 0.0
    %374 = vmatpush2.msra.mxu0 0.0
    %375 = vmatprep.subr.mxu0 0.0
    %376 = vmatpush2.msra.mxu0 0.0
    %377 = vmatprep.subr.mxu0 0.0
    %378 = vmatpush2.msra.mxu0 0.0
    %379 = vmatprep.subr.mxu0 0.0
    %380 = vmatpush2.msra.mxu0 0.0
    %381 = vmatprep.subr.mxu0 0.0
    %382 = vmatpush2.msra.mxu0 0.0
    %383 = vmatprep.subr.mxu0 0.0
    %384 = vmatpush2.msra.mxu0 0.0
    %385 = vmatprep.subr.mxu0 0.0
    %386 = vmatpush2.msra.mxu0 0.0
    %387 = vmatprep.subr.mxu0 0.0
    %388 = vmatpush2.msra.mxu0 0.0
    %389 = vmatprep.subr.mxu0 0.0
    %390 = vmatpush2.msra.mxu0 0.0
    %391 = vmatprep.subr.mxu0 0.0
    %392 = vmatpush2.msra.mxu0 0.0
    %393 = vmatprep.subr.mxu0 0.0
    %394 = vmatpush2.msra.mxu0 0.0
    %395 = vmatprep.subr.mxu0 0.0
    %396 = vmatpush2.msra.mxu0 0.0
    %397 = vmatprep.mubr.f32.mxu0 0.0
    %398 = vmatmul.mubr.f32.gmra.mxu0 %v306
    %v399 = vpop.f32.mrf.mxu0
    %v400 = vadd.f32 %v331, %v399
    %v401 = vpop.f32.mrf.mxu0
    %402 = vmatprep.mubr.f32.mxu0 0.0
    %403 = vmatmul.mubr.f32.gmra.mxu0 %v307
    %v404 = vpop.f32.mrf.mxu0
    %v405 = vadd.f32 %v331, %v404
    %v406 = vpop.f32.mrf.mxu0
    %407 = vmatprep.mubr.f32.mxu0 0.0
    %408 = vmatmul.mubr.f32.gmra.mxu0 %v308
    %v409 = vpop.f32.mrf.mxu0
    %v410 = vadd.f32 %v331, %v409
    %v411 = vpop.f32.mrf.mxu0
    %412 = vmatprep.mubr.f32.mxu0 0.0
    %413 = vmatmul.mubr.f32.gmra.mxu0 %v309
    %v414 = vpop.f32.mrf.mxu0
    %v415 = vadd.f32 %v331, %v414
    %v416 = vpop.f32.mrf.mxu0
    %417 = vdwg.mxu0
    %418 = vmax.xlane.f32.xlu0 %v400
    %v419 = vpop.xlane.xlu0 %418
    %420 = vmax.xlane.f32.xlu0 %v405
    %v421 = vpop.xlane.xlu0 %420
    %422 = vmax.xlane.f32.xlu0 %v410
    %v423 = vpop.xlane.xlu0 %422
    %424 = vmax.xlane.f32.xlu0 %v415
    %v425 = vpop.xlane.xlu0 %424
    %v426 = vsub.f32 %v400, %v419
    %v427 = vsub.f32 %v405, %v421
    %v428 = vsub.f32 %v410, %v423
    %v429 = vsub.f32 %v415, %v425
    %v430 = vmul.f32 %v426, 1.442695
    %v431 = vpow.pop %v430
    %v432 = vmul.f32 %v427, 1.442695
    %v433 = vpow.pop %v432
    %v434 = vmul.f32 %v428, 1.442695
    %v435 = vpow.pop %v434
    %v436 = vmul.f32 %v429, 1.442695
    %v437 = vpow.pop %v436
    %438 = vadd.xlane.f32.xlu0 %v431
    %v439 = vpop.xlane.xlu0 %438
    %440 = vadd.xlane.f32.xlu0 %v433
    %v441 = vpop.xlane.xlu0 %440
    %442 = vadd.xlane.f32.xlu0 %v435
    %v443 = vpop.xlane.xlu0 %442
    %444 = vadd.xlane.f32.xlu0 %v437
    %v445 = vpop.xlane.xlu0 %444
    %v446 = vrcp.pop %v439
    %v447 = vmul.f32 %v431, %v446
    %v448 = vrcp.pop %v441
    %v449 = vmul.f32 %v433, %v448
    %v450 = vrcp.pop %v443
    %v451 = vmul.f32 %v435, %v450
    %v452 = vrcp.pop %v445
    %v453 = vmul.f32 %v437, %v452
    %454 = vst [vmem:[#allocation10] sm:$0xff] %v447
    %455 = vst [vmem:[#allocation10 + $0x8] sm:$0xff] %v449
    %456 = vst [vmem:[#allocation10 + $0x10] sm:$0xff] %v451
    %457 = vst [vmem:[#allocation10 + $0x18] sm:$0xff] %v453
    // Predicated region
    $region46: #{tpu_custom_call.1} parent=1 // pred_check
      _
    $region47: #{tpu_custom_call.1} parent=1 // pred_check_branch
      %459 = sbr.rel (0) target = $region49
    $region48: #{tpu_custom_call.1} parent=1 // pred_region
      %s461 = ssub.s32 512, 512
      %462 = vsyncadd [#allocation4], %s461
      %s463 = sshll.u32 [#allocation10], 4
      %s464 = int_to_ptr.vmem [resolvable:$true] %s463
      %469 = dma.vmem_to_hbm [thread:$0]  %s464, 512, %s7, [#allocation4], 128, 128, 8
    $region49: #{tpu_custom_call.1} parent=1 // pred_fallthru
      _
    // Predicated region
    $region50: #{tpu_custom_call.1} parent=1 // pred_check
      _
    $region51: #{tpu_custom_call.1} parent=1 // pred_check_branch
      %471 = sbr.rel (0) target = $region53
    $region52: #{tpu_custom_call.1} parent=1 // pred_region
      %472 = dma.done [#allocation4], 512
    $region53: #{tpu_custom_call.1} parent=1 // pred_fallthru
      _
    %473 = vsyncpa [#allocation3], 1
    %474 = vsyncpa [#allocation6], 1
    %475 = vsyncpa [#allocation9], 1
    %476 = vsyncpa [#allocation4], 1

// kernel: tpu_custom_call.1
$region0: #{tpu_custom_call.1}
  #allocation0 [shape = 'u32[]', space=smem, size = 0x4, offset = 0x4, fixed_abs, tag = 'smem constant byte address 0x4 - core index']
  #allocation1 [shape = 'u32[144,128]{1,0:T(1,128)}', space=vmem, size = 0x12000, scoped, tag = 'internal scratch']
  %s0 = inlined_call_operand.hbm [shape: f32[32,128], index: 0, kind: input, shape index: {}]
  %s1 = inlined_call_operand.hbm [shape: f32[128,128], index: 1, kind: input, shape index: {}]
  %s2 = inlined_call_operand.vmem [shape: f32[1,128], index: 2, kind: input, shape index: {}]
  %s3 = inlined_call_operand.hbm [shape: f32[128,128], index: 3, kind: input, shape index: {}]
  %s4 = inlined_call_operand.vmem [shape: f32[1,128], index: 4, kind: input, shape index: {}]
  %s5 = inlined_call_operand.hbm [shape: f32[128,128], index: 5, kind: input, shape index: {}]
  %s6 = inlined_call_operand.vmem [shape: f32[1,128], index: 6, kind: input, shape index: {}]
  %s7 = inlined_call_operand.hbm [shape: f32[32,128], index: 7, kind: output, shape index: {}]
  %s8 = sld [smem:[#allocation0]]
  $region54: #{tpu_custom_call.1} parent=0
    _
  %s10 = ssub.s32 1, %s8
  %s11 = scalar_select 0, %s10, %s8
  $region1: #{tpu_custom_call.1} parent=0
    #allocation2 [shape = 'u8[16384]{0}', space=vmem, size = 0x4000, scoped, tag = 'input window, operand 0, single buffered']
    #allocation3 [shape = 's32[1]{0}', space=sflag, size = 0x4, scoped, tag = 'scoped memory for tpu_custom_call.1']
    #allocation4 [shape = 's32[1]{0}', space=sflag, size = 0x4, scoped, tag = 'scoped memory for tpu_custom_call.1']
    #allocation5 [shape = 'u8[65536]{0}', space=vmem, size = 0x10000, scoped, tag = 'input window, operand 1, single buffered']
    #allocation6 [shape = 's32[1]{0}', space=sflag, size = 0x4, scoped, tag = 'scoped memory for tpu_custom_call.1']
    #allocation7 [shape = 'u8[65536]{0}', space=vmem, size = 0x10000, scoped, tag = 'input window, operand 3, single buffered']
    #allocation8 [shape = 'u8[65536]{0}', space=vmem, size = 0x10000, scoped, tag = 'input window, operand 5, single buffered']
    #allocation9 [shape = 's32[1]{0}', space=sflag, size = 0x4, scoped, tag = 'scoped memory for tpu_custom_call.1']
    #allocation10 [shape = 'u8[16384]{0}', space=vmem, size = 0x4000, scoped, tag = 'output window, operand 0, single buffered']
    %12 = vsyncpa [#allocation3], 0
    %13 = vsyncpa [#allocation6], 0
    %14 = vsyncpa [#allocation9], 0
    %15 = vsyncpa [#allocation4], 0
    // Predicated region
    $region2: #{tpu_custom_call.1} parent=1 // pred_check
      _
    $region3: #{tpu_custom_call.1} parent=1 // pred_check_branch
      %17 = sbr.rel (0) target = $region5
    $region4: #{tpu_custom_call.1} parent=1 // pred_region
      %s19 = ssub.s32 512, 512
      %20 = vsyncadd [#allocation3], %s19
      %s21 = sshll.u32 [#allocation2], 4
      %s22 = int_to_ptr.vmem [resolvable:$true] %s21
      %27 = dma.hbm_to_vmem [thread:$0]  %s0, 512, %s22, [#allocation3], 128, 128, 8
    $region5: #{tpu_custom_call.1} parent=1 // pred_fallthru
      _
    // Predicated region
    $region6: #{tpu_custom_call.1} parent=1 // pred_check
      _
    $region7: #{tpu_custom_call.1} parent=1 // pred_check_branch
      %29 = sbr.rel (0) target = $region9
    $region8: #{tpu_custom_call.1} parent=1 // pred_region
      %s31 = ssub.s32 2048, 2048
      %32 = vsyncadd [#allocation6], %s31
      %s33 = sshll.u32 [#allocation5], 4
      %s34 = int_to_ptr.vmem [resolvable:$true] %s33
      %39 = dma.hbm_to_vmem [thread:$0]  %s1, 2048, %s34, [#allocation6], 128, 128, 8
    $region9: #{tpu_custom_call.1} parent=1 // pred_fallthru
      _
    // Predicated region
    $region10: #{tpu_custom_call.1} parent=1 // pred_check
      _
    $region11: #{tpu_custom_call.1} parent=1 // pred_check_branch
      %41 = sbr.rel (0) target = $region13
    $region12: #{tpu_custom_call.1} parent=1 // pred_region
      _
    $region13: #{tpu_custom_call.1} parent=1 // pred_fallthru
      _
    // Predicated region
    $region14: #{tpu_custom_call.1} parent=1 // pred_check
      _
    $region15: #{tpu_custom_call.1} parent=1 // pred_check_branch
      %43 = sbr.rel (0) target = $region17
    $region16: #{tpu_custom_call.1} parent=1 // pred_region
      %s45 = ssub.s32 2048, 2048
      %46 = vsyncadd [#allocation6], %s45
      %s47 = sshll.u32 [#allocation7], 4
      %s48 = int_to_ptr.vmem [resolvable:$true] %s47
      %53 = dma.hbm_to_vmem [thread:$0]  %s3, 2048, %s48, [#allocation6], 128, 128, 8
    $region17: #{tpu_custom_call.1} parent=1 // pred_fallthru
      _
    // Predicated region
    $region18: #{tpu_custom_call.1} parent=1 // pred_check
      _
    $region19: #{tpu_custom_call.1} parent=1 // pred_check_branch
      %55 = sbr.rel (0) target = $region21
    $region20: #{tpu_custom_call.1} parent=1 // pred_region
      _
    $region21: #{tpu_custom_call.1} parent=1 // pred_fallthru
      _
    // Predicated region
    $region22: #{tpu_custom_call.1} parent=1 // pred_check
      _
    $region23: #{tpu_custom_call.1} parent=1 // pred_check_branch
      %57 = sbr.rel (0) target = $region25
    $region24: #{tpu_custom_call.1} parent=1 // pred_region
      %s59 = ssub.s32 2048, 2048
      %60 = vsyncadd [#allocation9], %s59
      %s61 = sshll.u32 [#allocation8], 4
      %s62 = int_to_ptr.vmem [resolvable:$true] %s61
      %67 = dma.hbm_to_vmem [thread:$0]  %s5, 2048, %s62, [#allocation9], 128, 128, 8
    $region25: #{tpu_custom_call.1} parent=1 // pred_fallthru
      _
    // Predicated region
    $region26: #{tpu_custom_call.1} parent=1 // pred_check
      _
    $region27: #{tpu_custom_call.1} parent=1 // pred_check_branch
      %69 = sbr.rel (0) target = $region29
    $region28: #{tpu_custom_call.1} parent=1 // pred_region
      _
    $region29: #{tpu_custom_call.1} parent=1 // pred_fallthru
      _
    // Predicated region
    $region30: #{tpu_custom_call.1} parent=1 // pred_check
      _
    $region31: #{tpu_custom_call.1} parent=1 // pred_check_branch
      %71 = sbr.rel (0) target = $region33
    $region32: #{tpu_custom_call.1} parent=1 // pred_region
      %72 = dma.done [#allocation3], 512
    $region33: #{tpu_custom_call.1} parent=1 // pred_fallthru
      _
    // Predicated region
    $region34: #{tpu_custom_call.1} parent=1 // pred_check
      _
    $region35: #{tpu_custom_call.1} parent=1 // pred_check_branch
      %74 = sbr.rel (0) target = $region37
    $region36: #{tpu_custom_call.1} parent=1 // pred_region
      %75 = dma.done [#allocation6], 2048
    $region37: #{tpu_custom_call.1} parent=1 // pred_fallthru
      _
    // Predicated region
    $region38: #{tpu_custom_call.1} parent=1 // pred_check
      _
    $region39: #{tpu_custom_call.1} parent=1 // pred_check_branch
      %77 = sbr.rel (0) target = $region41
    $region40: #{tpu_custom_call.1} parent=1 // pred_region
      %78 = dma.done [#allocation6], 2048
    $region41: #{tpu_custom_call.1} parent=1 // pred_fallthru
      _
    // Predicated region
    $region42: #{tpu_custom_call.1} parent=1 // pred_check
      _
    $region43: #{tpu_custom_call.1} parent=1 // pred_check_branch
      %80 = sbr.rel (0) target = $region45
    $region44: #{tpu_custom_call.1} parent=1 // pred_region
      %81 = dma.done [#allocation9], 2048
    $region45: #{tpu_custom_call.1} parent=1 // pred_fallthru
      _
    %v82 = vld [vmem:[#allocation2] sm:$0xff]
    %v83 = vld [vmem:[#allocation2 + $0x8] sm:$0xff]
    %v84 = vld [vmem:[#allocation2 + $0x10] sm:$0xff]
    %v85 = vld [vmem:[#allocation2 + $0x18] sm:$0xff]
    %v86 = vld [vmem:[#allocation5] sm:$0xff]
    %v87 = vld [vmem:[#allocation5 + $0x8] sm:$0xff]
    %v88 = vld [vmem:[#allocation5 + $0x10] sm:$0xff]
    %v89 = vld [vmem:[#allocation5 + $0x18] sm:$0xff]
    %v90 = vld [vmem:[#allocation5 + $0x20] sm:$0xff]
    %v91 = vld [vmem:[#allocation5 + $0x28] sm:$0xff]
    %v92 = vld [vmem:[#allocation5 + $0x30] sm:$0xff]
    %v93 = vld [vmem:[#allocation5 + $0x38] sm:$0xff]
    %v94 = vld [vmem:[#allocation5 + $0x40] sm:$0xff]
    %v95 = vld [vmem:[#allocation5 + $0x48] sm:$0xff]
    %v96 = vld [vmem:[#allocation5 + $0x50] sm:$0xff]
    %v97 = vld [vmem:[#allocation5 + $0x58] sm:$0xff]
    %v98 = vld [vmem:[#allocation5 + $0x60] sm:$0xff]
    %v99 = vld [vmem:[#allocation5 + $0x68] sm:$0xff]
    %v100 = vld [vmem:[#allocation5 + $0x70] sm:$0xff]
    %v101 = vld [vmem:[#allocation5 + $0x78] sm:$0xff]
    %v102 = vld [vmem:[%s2] sm:$0x1]
    %v104 = vlaneseq
    %v105 = vshrl.u32 %v104, 7
    %v106 = vsub.s32 0, %v105
    %v107 = vrot.slane %v102, %v106
    %109 = vmatprep.subr.mxu0 0.0
    %110 = vmatpush1.msra.mxu0 %v101
    %111 = vmatprep.subr.mxu0 0.0
    %112 = vmatpush1.msra.mxu0 %v100
    %113 = vmatprep.subr.mxu0 0.0
    %114 = vmatpush1.msra.mxu0 %v99
    %115 = vmatprep.subr.mxu0 0.0
    %116 = vmatpush1.msra.mxu0 %v98
    %117 = vmatprep.subr.mxu0 0.0
    %118 = vmatpush1.msra.mxu0 %v97
    %119 = vmatprep.subr.mxu0 0.0
    %120 = vmatpush1.msra.mxu0 %v96
    %121 = vmatprep.subr.mxu0 0.0
    %122 = vmatpush1.msra.mxu0 %v95
    %123 = vmatprep.subr.mxu0 0.0
    %124 = vmatpush1.msra.mxu0 %v94
    %125 = vmatprep.subr.mxu0 0.0
    %126 = vmatpush1.msra.mxu0 %v93
    %127 = vmatprep.subr.mxu0 0.0
    %128 = vmatpush1.msra.mxu0 %v92
    %129 = vmatprep.subr.mxu0 0.0
    %130 = vmatpush1.msra.mxu0 %v91
    %131 = vmatprep.subr.mxu0 0.0
    %132 = vmatpush1.msra.mxu0 %v90
    %133 = vmatprep.subr.mxu0 0.0
    %134 = vmatpush1.msra.mxu0 %v89
    %135 = vmatprep.subr.mxu0 0.0
    %136 = vmatpush1.msra.mxu0 %v88
    %137 = vmatprep.subr.mxu0 0.0
    %138 = vmatpush1.msra.mxu0 %v87
    %139 = vmatprep.subr.mxu0 0.0
    %140 = vmatpush1.msra.mxu0 %v86
    %141 = vmatprep.subr.mxu0 0.0
    %142 = vmatpush2.msra.mxu0 0.0
    %143 = vmatprep.subr.mxu0 0.0
    %144 = vmatpush2.msra.mxu0 0.0
    %145 = vmatprep.subr.mxu0 0.0
    %146 = vmatpush2.msra.mxu0 0.0
    %147 = vmatprep.subr.mxu0 0.0
    %148 = vmatpush2.msra.mxu0 0.0
    %149 = vmatprep.subr.mxu0 0.0
    %150 = vmatpush2.msra.mxu0 0.0
    %151 = vmatprep.subr.mxu0 0.0
    %152 = vmatpush2.msra.mxu0 0.0
    %153 = vmatprep.subr.mxu0 0.0
    %154 = vmatpush2.msra.mxu0 0.0
    %155 = vmatprep.subr.mxu0 0.0
    %156 = vmatpush2.msra.mxu0 0.0
    %157 = vmatprep.subr.mxu0 0.0
    %158 = vmatpush2.msra.mxu0 0.0
    %159 = vmatprep.subr.mxu0 0.0
    %160 = vmatpush2.msra.mxu0 0.0
    %161 = vmatprep.subr.mxu0 0.0
    %162 = vmatpush2.msra.mxu0 0.0
    %163 = vmatprep.subr.mxu0 0.0
    %164 = vmatpush2.msra.mxu0 0.0
    %165 = vmatprep.subr.mxu0 0.0
    %166 = vmatpush2.msra.mxu0 0.0
    %167 = vmatprep.subr.mxu0 0.0
    %168 = vmatpush2.msra.mxu0 0.0
    %169 = vmatprep.subr.mxu0 0.0
    %170 = vmatpush2.msra.mxu0 0.0
    %171 = vmatprep.subr.mxu0 0.0
    %172 = vmatpush2.msra.mxu0 0.0
    %173 = vmatprep.mubr.f32.mxu0 0.0
    %174 = vmatmul.mubr.f32.gmra.mxu0 %v82
    %v175 = vpop.f32.mrf.mxu0
    %v176 = vadd.f32 %v107, %v175
    %v177 = vpop.f32.mrf.mxu0
    %178 = vmatprep.mubr.f32.mxu0 0.0
    %179 = vmatmul.mubr.f32.gmra.mxu0 %v83
    %v180 = vpop.f32.mrf.mxu0
    %v181 = vadd.f32 %v107, %v180
    %v182 = vpop.f32.mrf.mxu0
    %183 = vmatprep.mubr.f32.mxu0 0.0
    %184 = vmatmul.mubr.f32.gmra.mxu0 %v84
    %v185 = vpop.f32.mrf.mxu0
    %v186 = vadd.f32 %v107, %v185
    %v187 = vpop.f32.mrf.mxu0
    %188 = vmatprep.mubr.f32.mxu0 0.0
    %189 = vmatmul.mubr.f32.gmra.mxu0 %v85
    %v190 = vpop.f32.mrf.mxu0
    %v191 = vadd.f32 %v107, %v190
    %v192 = vpop.f32.mrf.mxu0
    %193 = vdwg.mxu0
    %v194 = vmax.f32 %v176, 0.0
    %v195 = vmax.f32 %v181, 0.0
    %v196 = vmax.f32 %v186, 0.0
    %v197 = vmax.f32 %v191, 0.0
    %v198 = vld [vmem:[#allocation7] sm:$0xff]
    %v199 = vld [vmem:[#allocation7 + $0x8] sm:$0xff]
    %v200 = vld [vmem:[#allocation7 + $0x10] sm:$0xff]
    %v201 = vld [vmem:[#allocation7 + $0x18] sm:$0xff]
    %v202 = vld [vmem:[#allocation7 + $0x20] sm:$0xff]
    %v203 = vld [vmem:[#allocation7 + $0x28] sm:$0xff]
    %v204 = vld [vmem:[#allocation7 + $0x30] sm:$0xff]
    %v205 = vld [vmem:[#allocation7 + $0x38] sm:$0xff]
    %v206 = vld [vmem:[#allocation7 + $0x40] sm:$0xff]
    %v207 = vld [vmem:[#allocation7 + $0x48] sm:$0xff]
    %v208 = vld [vmem:[#allocation7 + $0x50] sm:$0xff]
    %v209 = vld [vmem:[#allocation7 + $0x58] sm:$0xff]
    %v210 = vld [vmem:[#allocation7 + $0x60] sm:$0xff]
    %v211 = vld [vmem:[#allocation7 + $0x68] sm:$0xff]
    %v212 = vld [vmem:[#allocation7 + $0x70] sm:$0xff]
    %v213 = vld [vmem:[#allocation7 + $0x78] sm:$0xff]
    %v214 = vld [vmem:[%s4] sm:$0x1]
    %v216 = vlaneseq
    %v217 = vshrl.u32 %v216, 7
    %v218 = vsub.s32 0, %v217
    %v219 = vrot.slane %v214, %v218
    %221 = vmatprep.subr.mxu0 0.0
    %222 = vmatpush1.msra.mxu0 %v213
    %223 = vmatprep.subr.mxu0 0.0
    %224 = vmatpush1.msra.mxu0 %v212
    %225 = vmatprep.subr.mxu0 0.0
    %226 = vmatpush1.msra.mxu0 %v211
    %227 = vmatprep.subr.mxu0 0.0
    %228 = vmatpush1.msra.mxu0 %v210
    %229 = vmatprep.subr.mxu0 0.0
    %230 = vmatpush1.msra.mxu0 %v209
    %231 = vmatprep.subr.mxu0 0.0
    %232 = vmatpush1.msra.mxu0 %v208
    %233 = vmatprep.subr.mxu0 0.0
    %234 = vmatpush1.msra.mxu0 %v207
    %235 = vmatprep.subr.mxu0 0.0
    %236 = vmatpush1.msra.mxu0 %v206
    %237 = vmatprep.subr.mxu0 0.0
    %238 = vmatpush1.msra.mxu0 %v205
    %239 = vmatprep.subr.mxu0 0.0
    %240 = vmatpush1.msra.mxu0 %v204
    %241 = vmatprep.subr.mxu0 0.0
    %242 = vmatpush1.msra.mxu0 %v203
    %243 = vmatprep.subr.mxu0 0.0
    %244 = vmatpush1.msra.mxu0 %v202
    %245 = vmatprep.subr.mxu0 0.0
    %246 = vmatpush1.msra.mxu0 %v201
    %247 = vmatprep.subr.mxu0 0.0
    %248 = vmatpush1.msra.mxu0 %v200
    %249 = vmatprep.subr.mxu0 0.0
    %250 = vmatpush1.msra.mxu0 %v199
    %251 = vmatprep.subr.mxu0 0.0
    %252 = vmatpush1.msra.mxu0 %v198
    %253 = vmatprep.subr.mxu0 0.0
    %254 = vmatpush2.msra.mxu0 0.0
    %255 = vmatprep.subr.mxu0 0.0
    %256 = vmatpush2.msra.mxu0 0.0
    %257 = vmatprep.subr.mxu0 0.0
    %258 = vmatpush2.msra.mxu0 0.0
    %259 = vmatprep.subr.mxu0 0.0
    %260 = vmatpush2.msra.mxu0 0.0
    %261 = vmatprep.subr.mxu0 0.0
    %262 = vmatpush2.msra.mxu0 0.0
    %263 = vmatprep.subr.mxu0 0.0
    %264 = vmatpush2.msra.mxu0 0.0
    %265 = vmatprep.subr.mxu0 0.0
    %266 = vmatpush2.msra.mxu0 0.0
    %267 = vmatprep.subr.mxu0 0.0
    %268 = vmatpush2.msra.mxu0 0.0
    %269 = vmatprep.subr.mxu0 0.0
    %270 = vmatpush2.msra.mxu0 0.0
    %271 = vmatprep.subr.mxu0 0.0
    %272 = vmatpush2.msra.mxu0 0.0
    %273 = vmatprep.subr.mxu0 0.0
    %274 = vmatpush2.msra.mxu0 0.0
    %275 = vmatprep.subr.mxu0 0.0
    %276 = vmatpush2.msra.mxu0 0.0
    %277 = vmatprep.subr.mxu0 0.0
    %278 = vmatpush2.msra.mxu0 0.0
    %279 = vmatprep.subr.mxu0 0.0
    %280 = vmatpush2.msra.mxu0 0.0
    %281 = vmatprep.subr.mxu0 0.0
    %282 = vmatpush2.msra.mxu0 0.0
    %283 = vmatprep.subr.mxu0 0.0
    %284 = vmatpush2.msra.mxu0 0.0
    %285 = vmatprep.mubr.f32.mxu0 0.0
    %286 = vmatmul.mubr.f32.gmra.mxu0 %v194
    %v287 = vpop.f32.mrf.mxu0
    %v288 = vadd.f32 %v219, %v287
    %v289 = vpop.f32.mrf.mxu0
    %290 = vmatprep.mubr.f32.mxu0 0.0
    %291 = vmatmul.mubr.f32.gmra.mxu0 %v195
    %v292 = vpop.f32.mrf.mxu0
    %v293 = vadd.f32 %v219, %v292
    %v294 = vpop.f32.mrf.mxu0
    %295 = vmatprep.mubr.f32.mxu0 0.0
    %296 = vmatmul.mubr.f32.gmra.mxu0 %v196
    %v297 = vpop.f32.mrf.mxu0
    %v298 = vadd.f32 %v219, %v297
    %v299 = vpop.f32.mrf.mxu0
    %300 = vmatprep.mubr.f32.mxu0 0.0
    %301 = vmatmul.mubr.f32.gmra.mxu0 %v197
    %v302 = vpop.f32.mrf.mxu0
    %v303 = vadd.f32 %v219, %v302
    %v304 = vpop.f32.mrf.mxu0
    %305 = vdwg.mxu0
    %v306 = vmax.f32 %v288, 0.0
    %v307 = vmax.f32 %v293, 0.0
    %v308 = vmax.f32 %v298, 0.0
    %v309 = vmax.f32 %v303, 0.0
    %v310 = vld [vmem:[#allocation8] sm:$0xff]
    %v311 = vld [vmem:[#allocation8 + $0x8] sm:$0xff]
    %v312 = vld [vmem:[#allocation8 + $0x10] sm:$0xff]
    %v313 = vld [vmem:[#allocation8 + $0x18] sm:$0xff]
    %v314 = vld [vmem:[#allocation8 + $0x20] sm:$0xff]
    %v315 = vld [vmem:[#allocation8 + $0x28] sm:$0xff]
    %v316 = vld [vmem:[#allocation8 + $0x30] sm:$0xff]
    %v317 = vld [vmem:[#allocation8 + $0x38] sm:$0xff]
    %v318 = vld [vmem:[#allocation8 + $0x40] sm:$0xff]
    %v319 = vld [vmem:[#allocation8 + $0x48] sm:$0xff]
    %v320 = vld [vmem:[#allocation8 + $0x50] sm:$0xff]
    %v321 = vld [vmem:[#allocation8 + $0x58] sm:$0xff]
    %v322 = vld [vmem:[#allocation8 + $0x60] sm:$0xff]
    %v323 = vld [vmem:[#allocation8 + $0x68] sm:$0xff]
    %v324 = vld [vmem:[#allocation8 + $0x70] sm:$0xff]
    %v325 = vld [vmem:[#allocation8 + $0x78] sm:$0xff]
    %v326 = vld [vmem:[%s6] sm:$0x1]
    %v328 = vlaneseq
    %v329 = vshrl.u32 %v328, 7
    %v330 = vsub.s32 0, %v329
    %v331 = vrot.slane %v326, %v330
    %333 = vmatprep.subr.mxu0 0.0
    %334 = vmatpush1.msra.mxu0 %v325
    %335 = vmatprep.subr.mxu0 0.0
    %336 = vmatpush1.msra.mxu0 %v324
    %337 = vmatprep.subr.mxu0 0.0
    %338 = vmatpush1.msra.mxu0 %v323
    %339 = vmatprep.subr.mxu0 0.0
    %340 = vmatpush1.msra.mxu0 %v322
    %341 = vmatprep.subr.mxu0 0.0
    %342 = vmatpush1.msra.mxu0 %v321
    %343 = vmatprep.subr.mxu0 0.0
    %344 = vmatpush1.msra.mxu0 %v320
    %345 = vmatprep.subr.mxu0 0.0
    %346 = vmatpush1.msra.mxu0 %v319
    %347 = vmatprep.subr.mxu0 0.0
    %348 = vmatpush1.msra.mxu0 %v318
    %349 = vmatprep.subr.mxu0 0.0
    %350 = vmatpush1.msra.mxu0 %v317
    %351 = vmatprep.subr.mxu0 0.0
    %352 = vmatpush1.msra.mxu0 %v316
    %353 = vmatprep.subr.mxu0 0.0
    %354 = vmatpush1.msra.mxu0 %v315
    %355 = vmatprep.subr.mxu0 0.0
    %356 = vmatpush1.msra.mxu0 %v314
    %357 = vmatprep.subr.mxu0 0.0
    %358 = vmatpush1.msra.mxu0 %v313
    %359 = vmatprep.subr.mxu0 0.0
    %360 = vmatpush1.msra.mxu0 %v312
    %361 = vmatprep.subr.mxu0 0.0
    %362 = vmatpush1.msra.mxu0 %v311
    %363 = vmatprep.subr.mxu0 0.0
    %364 = vmatpush1.msra.mxu0 %v310
    %365 = vmatprep.subr.mxu0 0.0
    %366 = vmatpush2.msra.mxu0 0.0
    %367 = vmatprep.subr.mxu0 0.0
    %368 = vmatpush2.msra.mxu0 0.0
    %369 = vmatprep.subr.mxu0 0.0
    %370 = vmatpush2.msra.mxu0 0.0
    %371 = vmatprep.subr.mxu0 0.0
    %372 = vmatpush2.msra.mxu0 0.0
    %373 = vmatprep.subr.mxu0 0.0
    %374 = vmatpush2.msra.mxu0 0.0
    %375 = vmatprep.subr.mxu0 0.0
    %376 = vmatpush2.msra.mxu0 0.0
    %377 = vmatprep.subr.mxu0 0.0
    %378 = vmatpush2.msra.mxu0 0.0
    %379 = vmatprep.subr.mxu0 0.0
    %380 = vmatpush2.msra.mxu0 0.0
    %381 = vmatprep.subr.mxu0 0.0
    %382 = vmatpush2.msra.mxu0 0.0
    %383 = vmatprep.subr.mxu0 0.0
    %384 = vmatpush2.msra.mxu0 0.0
    %385 = vmatprep.subr.mxu0 0.0
    %386 = vmatpush2.msra.mxu0 0.0
    %387 = vmatprep.subr.mxu0 0.0
    %388 = vmatpush2.msra.mxu0 0.0
    %389 = vmatprep.subr.mxu0 0.0
    %390 = vmatpush2.msra.mxu0 0.0
    %391 = vmatprep.subr.mxu0 0.0
    %392 = vmatpush2.msra.mxu0 0.0
    %393 = vmatprep.subr.mxu0 0.0
    %394 = vmatpush2.msra.mxu0 0.0
    %395 = vmatprep.subr.mxu0 0.0
    %396 = vmatpush2.msra.mxu0 0.0
    %397 = vmatprep.mubr.f32.mxu0 0.0
    %398 = vmatmul.mubr.f32.gmra.mxu0 %v306
    %v399 = vpop.f32.mrf.mxu0
    %v400 = vadd.f32 %v331, %v399
    %v401 = vpop.f32.mrf.mxu0
    %402 = vmatprep.mubr.f32.mxu0 0.0
    %403 = vmatmul.mubr.f32.gmra.mxu0 %v307
    %v404 = vpop.f32.mrf.mxu0
    %v405 = vadd.f32 %v331, %v404
    %v406 = vpop.f32.mrf.mxu0
    %407 = vmatprep.mubr.f32.mxu0 0.0
    %408 = vmatmul.mubr.f32.gmra.mxu0 %v308
    %v409 = vpop.f32.mrf.mxu0
    %v410 = vadd.f32 %v331, %v409
    %v411 = vpop.f32.mrf.mxu0
    %412 = vmatprep.mubr.f32.mxu0 0.0
    %413 = vmatmul.mubr.f32.gmra.mxu0 %v309
    %v414 = vpop.f32.mrf.mxu0
    %v415 = vadd.f32 %v331, %v414
    %v416 = vpop.f32.mrf.mxu0
    %417 = vdwg.mxu0
    %418 = vmax.xlane.f32.xlu0 %v400
    %v419 = vpop.xlane.xlu0 %418
    %420 = vmax.xlane.f32.xlu0 %v405
    %v421 = vpop.xlane.xlu0 %420
    %422 = vmax.xlane.f32.xlu0 %v410
    %v423 = vpop.xlane.xlu0 %422
    %424 = vmax.xlane.f32.xlu0 %v415
    %v425 = vpop.xlane.xlu0 %424
    %v426 = vsub.f32 %v400, %v419
    %v427 = vsub.f32 %v405, %v421
    %v428 = vsub.f32 %v410, %v423
    %v429 = vsub.f32 %v415, %v425
    %v430 = vmul.f32 %v426, 1.442695
    %v431 = vpow.pop %v430
    %v432 = vmul.f32 %v427, 1.442695
    %v433 = vpow.pop %v432
    %v434 = vmul.f32 %v428, 1.442695
    %v435 = vpow.pop %v434
    %v436 = vmul.f32 %v429, 1.442695
    %v437 = vpow.pop %v436
    %438 = vadd.xlane.f32.xlu0 %v431
    %v439 = vpop.xlane.xlu0 %438
    %440 = vadd.xlane.f32.xlu0 %v433
    %v441 = vpop.xlane.xlu0 %440
    %442 = vadd.xlane.f32.xlu0 %v435
    %v443 = vpop.xlane.xlu0 %442
    %444 = vadd.xlane.f32.xlu0 %v437
    %v445 = vpop.xlane.xlu0 %444
    %v446 = vrcp.pop %v439
    %v447 = vmul.f32 %v431, %v446
    %v448 = vrcp.pop %v441
    %v449 = vmul.f32 %v433, %v448
    %v450 = vrcp.pop %v443
    %v451 = vmul.f32 %v435, %v450
    %v452 = vrcp.pop %v445
    %v453 = vmul.f32 %v437, %v452
    %454 = vst [vmem:[#allocation10] sm:$0xff] %v447
    %455 = vst [vmem:[#allocation10 + $0x8] sm:$0xff] %v449
    %456 = vst [vmem:[#allocation10 + $0x10] sm:$0xff] %v451
    %457 = vst [vmem:[#allocation10 + $0x18] sm:$0xff] %v453
    // Predicated region
    $region46: #{tpu_custom_call.1} parent=1 // pred_check
      _
    $region47: #{tpu_custom_call.1} parent=1 // pred_check_branch
      %459 = sbr.rel (0) target = $region49
    $region48: #{tpu_custom_call.1} parent=1 // pred_region
      %s461 = ssub.s32 512, 512
      %462 = vsyncadd [#allocation4], %s461
      %s463 = sshll.u32 [#allocation10], 4
      %s464 = int_to_ptr.vmem [resolvable:$true] %s463
      %469 = dma.vmem_to_hbm [thread:$0]  %s464, 512, %s7, [#allocation4], 128, 128, 8
    $region49: #{tpu_custom_call.1} parent=1 // pred_fallthru
      _
    // Predicated region
    $region50: #{tpu_custom_call.1} parent=1 // pred_check
      _
    $region51: #{tpu_custom_call.1} parent=1 // pred_check_branch
      %471 = sbr.rel (0) target = $region53
    $region52: #{tpu_custom_call.1} parent=1 // pred_region
      %472 = dma.done [#allocation4], 512
    $region53: #{tpu_custom_call.1} parent=1 // pred_fallthru
      _
    %473 = vsyncpa [#allocation3], 1
    %474 = vsyncpa [#allocation6], 1
    %475 = vsyncpa [#allocation9], 1
    %476 = vsyncpa [#allocation4], 1

</llo_original>
